<compile_context>
chip_gen: v7x
topology: tpu7x:2x2x1
jax: 0.10.0
libtpu: 0.0.40
codegen_flags: <defaults>
</compile_context>

<pallas_src>
import jax
import jax.numpy as jnp
import numpy as np
from jax import lax
from jax.experimental import pallas as pl
from jax.experimental.pallas import tpu as pltpu


def _pick_tile(m, pref=512):
    """Largest lane tile (multiple of 128, <= pref) that divides m; else full m."""
    if m % 128 != 0:
        return m
    t = min(pref, m)
    while m % t:
        t -= 128
    return t


# ---------------- Pallas kernels ----------------

def _down_kernel(w_ref, p_ref, o_ref):
    """LeakyReLU(0.2) + 4x4/s2 down-conv as (inner,K1)@(K1,TM) bf16 matmul + fused ReLU."""
    p = p_ref[...].astype(jnp.float32)
    p = jnp.where(p >= 0, p, 0.2 * p)                       # LeakyReLU in f32 (v5e-safe)
    y = jnp.dot(w_ref[...], p.astype(jnp.bfloat16),
                preferred_element_type=jnp.float32)         # (inner, TM) f32 acc
    o_ref[...] = jnp.maximum(y, 0.0).astype(o_ref.dtype)    # fuse the following ReLU


def _up_matmul_stats_kernel(w_ref, p_ref, z_ref, sum_ref, sq_ref):
    """BN pass 1: all-phase transposed conv (4,outer,K2)@(4,K2,TM) + global sum/sumsq."""
    @pl.when(pl.program_id(0) == 0)
    def _():
        sum_ref[...] = jnp.zeros_like(sum_ref)
        sq_ref[...] = jnp.zeros_like(sq_ref)
    z = jnp.einsum("pok,pkm->pom", w_ref[...], p_ref[...],
                   preferred_element_type=jnp.float32)       # (4, outer, TM) f32 acc
    z_ref[...] = z.astype(z_ref.dtype)                       # bf16 store for pass 2
    sum_ref[...] += jnp.sum(z, axis=(0, 2))[:, None]          # per-channel partial sums
    sq_ref[...] += jnp.sum(z * z, axis=(0, 2))[:, None]


def _bn_apply_kernel(z_ref, scale_ref, shift_ref, o_ref):
    """BN pass 2: y = z * (gamma*rsqrt(var+eps)) + (beta - mean*gamma*rsqrt(var+eps))."""
    z = z_ref[...].astype(jnp.float32)                       # (4, outer, TM)
    o_ref[...] = z * scale_ref[...][None] + shift_ref[...][None]


# ---------------- wrapper ----------------

def unet_innermost_forward(x_nchw, params):
    """Forward of the innermost UnetSkipConnectionBlock: cat([x, up(down(x))], 1)."""
    wd = params["down_w"]        # (inner_nc, input_nc, 4, 4)  -- torch Conv2d OIHW
    wu = params["up_w"]          # (inner_nc, outer_nc, 4, 4)  -- torch ConvTranspose2d
    gamma = params["bn_gamma"].astype(jnp.float32)
    beta = params["bn_beta"].astype(jnp.float32)

    N, Cin, H, W = x_nchw.shape
    inner = wd.shape[0]
    outer = wu.shape[1]
    Ho, Wo = H // 2, W // 2
    M = N * Ho * Wo
    K1 = Cin * 16
    K2 = inner * 4
    TM = _pick_tile(M)
    x32 = x_nchw.astype(jnp.float32)

    # ---- down conv (k=4, s=2, p=1): channel-major im2col, patches (K1, M) in bf16 ----
    # TODO(synk): tap gathering could be moved fully in-kernel (strided VMEM slices) to
    # cut the remaining 16x HBM read amplification of the patch matrix.
    xb = x32.astype(jnp.bfloat16)
    xp = jnp.pad(xb, ((0, 0), (0, 0), (1, 1), (1, 1)))
    taps = [xp[:, :, kh:kh + 2 * Ho:2, kw:kw + 2 * Wo:2]
            for kh in range(4) for kw in range(4)]                       # 16 x (N,Cin,Ho,Wo)
    pd = jnp.stack(taps, axis=2).transpose(1, 2, 0, 3, 4).reshape(K1, M)  # rows (cin,kh,kw)
    wd_mat = wd.reshape(inner, K1).astype(jnp.bfloat16)                   # same row order

    y = pl.pallas_call(
        _down_kernel,
        out_shape=jax.ShapeDtypeStruct((inner, M), jnp.bfloat16),
        grid=(M // TM,),
        in_specs=[pl.BlockSpec((inner, K1), lambda m: (0, 0)),
                  pl.BlockSpec((K1, TM), lambda m: (0, m))],
        out_specs=pl.BlockSpec((inner, TM), lambda m: (0, m)),
        compiler_params=pltpu.CompilerParams(dimension_semantics=("parallel",)),
    )(wd_mat, pd)                                         # (inner, M) bf16, already ReLU'd

    # ---- transposed conv (k=4, s=2, p=1): sub-pixel phase decomposition --------------
    # Output parity (a,b): z[n,oc,2i+a,2j+b] uses taps ih=i+dh-1, kh=3-2*dh+a (dh in {a,a+1}),
    # symmetric in w.  4 independent (outer,K2)@(K2,M) matmuls, no inserted zeros.
    yp = jnp.pad(y.reshape(inner, N, Ho, Wo), ((0, 0), (0, 0), (1, 1), (1, 1)))
    pu_list, wu_list = [], []
    for a in range(2):
        for b in range(2):
            t = [yp[:, :, dh:dh + Ho, dw:dw + Wo]
                 for dh in (a, a + 1) for dw in (b, b + 1)]              # 4 x (inner,N,Ho,Wo)
            pu_list.append(jnp.stack(t, axis=1).reshape(K2, M))          # rows (ic, tap)
            wt = [wu[:, :, 3 - 2 * dh + a, 3 - 2 * dw + b]
                  for dh in (a, a + 1) for dw in (b, b + 1)]             # 4 x (inner,outer)
            wu_list.append(jnp.stack(wt, axis=1).transpose(2, 0, 1).reshape(outer, K2))
    pu_all = jnp.stack(pu_list, axis=0)                                  # (4, K2, M) bf16
    wu_all = jnp.stack(wu_list, axis=0).astype(jnp.bfloat16)             # (4, outer, K2)

    z_raw, zsum, zsq = pl.pallas_call(
        _up_matmul_stats_kernel,
        out_shape=(jax.ShapeDtypeStruct((4, outer, M), jnp.bfloat16),
                   jax.ShapeDtypeStruct((outer, 1), jnp.float32),
                   jax.ShapeDtypeStruct((outer, 1), jnp.float32)),
        grid=(M // TM,),
        in_specs=[pl.BlockSpec((4, outer, K2), lambda m: (0, 0, 0)),
                  pl.BlockSpec((4, K2, TM), lambda m: (0, 0, m))],
        out_specs=(pl.BlockSpec((4, outer, TM), lambda m: (0, 0, m)),
                   pl.BlockSpec((outer, 1), lambda m: (0, 0)),           # resident accumulator
                   pl.BlockSpec((outer, 1), lambda m: (0, 0))),
        compiler_params=pltpu.CompilerParams(dimension_semantics=("arbitrary",)),
    )(wu_all, pu_all)

    # ---- BatchNorm finalize (per-channel, tiny) + pass 2 apply ------------------------
    cnt = float(N * H * W)
    mean = zsum[:, 0] / cnt
    var = jnp.maximum(zsq[:, 0] / cnt - mean * mean, 0.0)    # biased var (training BN)
    inv = gamma * lax.rsqrt(var + 1e-5)
    scale = inv.reshape(outer, 1)
    shift = (beta - mean * inv).reshape(outer, 1)

    z_norm = pl.pallas_call(
        _bn_apply_kernel,
        out_shape=jax.ShapeDtypeStruct((4, outer, M), jnp.float32),
        grid=(M // TM,),
        in_specs=[pl.BlockSpec((4, outer, TM), lambda m: (0, 0, m)),
                  pl.BlockSpec((outer, 1), lambda m: (0, 0)),
                  pl.BlockSpec((outer, 1), lambda m: (0, 0))],
        out_specs=pl.BlockSpec((4, outer, TM), lambda m: (0, 0, m)),
        compiler_params=pltpu.CompilerParams(dimension_semantics=("parallel",)),
    )(z_raw, scale, shift)

    # ---- depth-to-space (re-interleave output parities) + skip concat (NCHW) ----------
    zb = z_norm.reshape(2, 2, outer, N, Ho, Wo).transpose(3, 2, 4, 0, 5, 1)
    z_nchw = zb.reshape(N, outer, H, W)
    return jnp.concatenate([x32, z_nchw], axis=1)


# ---------------- pure-JAX reference (verification only) ----------------

def _reference(x_nchw, params):
    """Reference; conv operands rounded through bf16 to mirror the MXU input precision."""
    bd = lambda a: a.astype(jnp.bfloat16).astype(jnp.float32)
    wd, wu = params["down_w"], params["up_w"]
    gamma, beta = params["bn_gamma"], params["bn_beta"]
    xq = bd(x_nchw)
    h = jnp.where(xq >= 0, xq, 0.2 * xq)
    y = lax.conv_general_dilated(
        bd(h), bd(wd), window_strides=(2, 2), padding=((1, 1), (1, 1)),
        dimension_numbers=("NCHW", "OIHW", "NCHW"))
    r = bd(jnp.maximum(y, 0.0))
    wc = jnp.transpose(wu, (1, 0, 2, 3))[:, :, ::-1, ::-1]
    z = lax.conv_general_dilated(
        r, bd(wc), window_strides=(1, 1), padding=((2, 2), (2, 2)),
        lhs_dilation=(2, 2), dimension_numbers=("NCHW", "OIHW", "NCHW"))
    mean = jnp.mean(z, axis=(0, 2, 3), keepdims=True)
    var = jnp.mean((z - mean) ** 2, axis=(0, 2, 3), keepdims=True)
    zbn = (z - mean) * lax.rsqrt(var + 1e-5) * gamma.reshape(1, -1, 1, 1) \
        + beta.reshape(1, -1, 1, 1)
    return jnp.concatenate([x_nchw, zbn], axis=1)


if __name__ == "__main__":
    # TODO(synk): only the innermost UnetSkipConnectionBlock is implemented; outermost /
    # middle variants wrap a submodule (+ optional Dropout / Tanh) and would be composed
    # from these same kernels at the JAX level.
    N, outer_nc, inner_nc, H, W = 2, 4, 8, 16, 16
    input_nc = outer_nc                                    # input_nc=None -> outer_nc

    key = jax.random.PRNGKey(0)
    k_x, k_wd, k_wu, k_g, k_b = jax.random.split(key, 5)
    x = jax.random.normal(k_x, (N, input_nc, H, W), jnp.float32)
    params = {
        "down_w": 0.1 * jax.random.normal(k_wd, (inner_nc, input_nc, 4, 4), jnp.float32),
        "up_w": 0.1 * jax.random.normal(k_wu, (inner_nc, outer_nc, 4, 4), jnp.float32),
        "bn_gamma": 1.0 + 0.1 * jax.random.normal(k_g, (outer_nc,), jnp.float32),
        "bn_beta": 0.1 * jax.random.normal(k_b, (outer_nc,), jnp.float32),
    }

    out = jax.jit(unet_innermost_forward)(x, params)
    out = jax.block_until_ready(out)
    assert out.shape == (N, 2 * outer_nc, H, W), out.shape

    ref = _reference(x, params)
    np.testing.assert_allclose(np.asarray(out), np.asarray(ref), rtol=1e-2, atol=1e-2)
    print("KERNEL_OK")
</pallas_src>

<mosaic_0001>
module attributes {stable_mosaic.version = 11 : i64} {
  func.func @_down_kernel(%arg0: i32, %arg1: memref<8x64xbf16, #tpu.memory_space<vmem>>, %arg2: memref<64x128xbf16, #tpu.memory_space<vmem>>, %arg3: memref<8x128xbf16, #tpu.memory_space<vmem>>) attributes {dimension_semantics = [#tpu.dimension_semantics<parallel>], iteration_bounds = array<i64: 1>, scalar_prefetch = 0 : i64, scratch_operands = 0 : i64, tpu.core_type = #tpu.core_type<tc>, window_params = [{pipeline_mode = #tpu.pipeline_mode<synchronous>, transform_indices = @transform_0, window_bounds = array<i64: 8, 64>}, {transform_indices = @transform_1, window_bounds = array<i64: 64, 128>}, {transform_indices = @transform_2, window_bounds = array<i64: 8, 128>}]} {
    %c0 = arith.constant 0 : index
    %c0_0 = arith.constant 0 : index
    %0 = vector.load %arg2[%c0, %c0_0] : memref<64x128xbf16, #tpu.memory_space<vmem>>, vector<64x128xbf16>
    %1 = arith.extf %0 : vector<64x128xbf16> to vector<64x128xf32>
    %cst = arith.constant 0.000000e+00 : f32
    %2 = vector.broadcast %cst : f32 to vector<64x128xf32>
    %3 = arith.cmpf oge, %1, %2 : vector<64x128xf32>
    %cst_1 = arith.constant 2.000000e-01 : f32
    %4 = vector.broadcast %cst_1 : f32 to vector<64x128xf32>
    %5 = arith.mulf %4, %1 : vector<64x128xf32>
    %6 = arith.select %3, %1, %5 : vector<64x128xi1>, vector<64x128xf32>
    %c0_2 = arith.constant 0 : index
    %c0_3 = arith.constant 0 : index
    %7 = vector.load %arg1[%c0_2, %c0_3] : memref<8x64xbf16, #tpu.memory_space<vmem>>, vector<8x64xbf16>
    %8 = arith.truncf %6 : vector<64x128xf32> to vector<64x128xbf16>
    %cst_4 = arith.constant dense<0.000000e+00> : vector<8x128xf32>
    %9 = tpu.matmul %7, %8, %cst_4 {dimension_numbers = #tpu.dot_dimension_numbers<[1], [0], [0], [1], [0, 0, 1, 1], [], []>} : vector<8x64xbf16>, vector<64x128xbf16>, vector<8x128xf32> -> vector<8x128xf32>
    %cst_5 = arith.constant 0.000000e+00 : f32
    %10 = vector.broadcast %cst_5 : f32 to vector<8x128xf32>
    %11 = arith.maximumf %9, %10 : vector<8x128xf32>
    %12 = arith.truncf %11 : vector<8x128xf32> to vector<8x128xbf16>
    %c0_6 = arith.constant 0 : index
    %c0_7 = arith.constant 0 : index
    %13 = vector.load %arg3[%c0_6, %c0_7] : memref<8x128xbf16, #tpu.memory_space<vmem>>, vector<8x128xbf16>
    tpu.vector_store %arg3[%c0_6, %c0_7], %12 {strides = array<i32>} : memref<8x128xbf16, #tpu.memory_space<vmem>>, vector<8x128xbf16>,
    return
  }
  func.func @transform_0(%arg0: i32) -> (i32, i32) {
    %c0_i32 = arith.constant 0 : i32
    %c0_i32_0 = arith.constant 0 : i32
    %c0_i32_1 = arith.constant 0 : i32
    return %c0_i32, %c0_i32_0 : i32, i32
  }
  func.func @transform_1(%arg0: i32) -> (i32, i32) {
    %c0_i32 = arith.constant 0 : i32
    %c0_i32_0 = arith.constant 0 : i32
    return %c0_i32, %arg0 : i32, i32
  }
  func.func @transform_2(%arg0: i32) -> (i32, i32) {
    %c0_i32 = arith.constant 0 : i32
    %c0_i32_0 = arith.constant 0 : i32
    return %c0_i32, %arg0 : i32, i32
  }
}

module attributes {stable_mosaic.version = 11 : i64} {
  func.func @_up_matmul_stats_kernel(%arg0: i32, %arg1: memref<4x4x32xbf16, #tpu.memory_space<vmem>>, %arg2: memref<4x32x128xbf16, #tpu.memory_space<vmem>>, %arg3: memref<4x4x128xbf16, #tpu.memory_space<vmem>>, %arg4: memref<4x1xf32, #tpu.memory_space<vmem>>, %arg5: memref<4x1xf32, #tpu.memory_space<vmem>>) attributes {dimension_semantics = [#tpu.dimension_semantics<arbitrary>], iteration_bounds = array<i64: 1>, scalar_prefetch = 0 : i64, scratch_operands = 0 : i64, tpu.core_type = #tpu.core_type<tc>, window_params = [{pipeline_mode = #tpu.pipeline_mode<synchronous>, transform_indices = @transform_0, window_bounds = array<i64: 4, 4, 32>}, {transform_indices = @transform_1, window_bounds = array<i64: 4, 32, 128>}, {transform_indices = @transform_2, window_bounds = array<i64: 4, 4, 128>}, {pipeline_mode = #tpu.pipeline_mode<synchronous>, transform_indices = @transform_3, window_bounds = array<i64: 4, 1>}, {pipeline_mode = #tpu.pipeline_mode<synchronous>, transform_indices = @transform_4, window_bounds = array<i64: 4, 1>}]} {
    %c0_i32 = arith.constant 0 : i32
    %0 = arith.cmpi eq, %arg0, %c0_i32 : i32
    %1 = arith.extui %0 : i1 to i32
    %c0_i32_0 = arith.constant 0 : i32
    %2 = arith.cmpi ne, %1, %c0_i32_0 : i32
    scf.if %2 {
      %cst_19 = arith.constant 0.000000e+00 : f32
      %19 = vector.broadcast %cst_19 : f32 to vector<4x1xf32>
      %c0_20 = arith.constant 0 : index
      %c0_21 = arith.constant 0 : index
      %20 = vector.load %arg4[%c0_20, %c0_21] : memref<4x1xf32, #tpu.memory_space<vmem>>, vector<4x1xf32>
      tpu.vector_store %arg4[%c0_20, %c0_21], %19 {strides = array<i32>} : memref<4x1xf32, #tpu.memory_space<vmem>>, vector<4x1xf32>,
      %cst_22 = arith.constant 0.000000e+00 : f32
      %21 = vector.broadcast %cst_22 : f32 to vector<4x1xf32>
      %c0_23 = arith.constant 0 : index
      %c0_24 = arith.constant 0 : index
      %22 = vector.load %arg5[%c0_23, %c0_24] : memref<4x1xf32, #tpu.memory_space<vmem>>, vector<4x1xf32>
      tpu.vector_store %arg5[%c0_23, %c0_24], %21 {strides = array<i32>} : memref<4x1xf32, #tpu.memory_space<vmem>>, vector<4x1xf32>,
    } else {
    }
    %c0 = arith.constant 0 : index
    %c0_1 = arith.constant 0 : index
    %c0_2 = arith.constant 0 : index
    %3 = vector.load %arg1[%c0, %c0_1, %c0_2] : memref<4x4x32xbf16, #tpu.memory_space<vmem>>, vector<4x4x32xbf16>
    %c0_3 = arith.constant 0 : index
    %c0_4 = arith.constant 0 : index
    %c0_5 = arith.constant 0 : index
    %4 = vector.load %arg2[%c0_3, %c0_4, %c0_5] : memref<4x32x128xbf16, #tpu.memory_space<vmem>>, vector<4x32x128xbf16>
    "tpu.trace_start"() <{level = 10 : i32, message = "pok,pkm->pom"}> : () -> ()
    %cst = arith.constant dense<0.000000e+00> : vector<4x4x128xf32>
    %5 = tpu.matmul %3, %4, %cst {dimension_numbers = #tpu.dot_dimension_numbers<[2], [1], [1], [2], [0, 0, 0, 1, 1, 2], [0], [0]>} : vector<4x4x32xbf16>, vector<4x32x128xbf16>, vector<4x4x128xf32> -> vector<4x4x128xf32>
    "tpu.trace_stop"() : () -> ()
    %6 = arith.truncf %5 : vector<4x4x128xf32> to vector<4x4x128xbf16>
    %c0_6 = arith.constant 0 : index
    %c0_7 = arith.constant 0 : index
    %c0_8 = arith.constant 0 : index
    %7 = vector.load %arg3[%c0_6, %c0_7, %c0_8] : memref<4x4x128xbf16, #tpu.memory_space<vmem>>, vector<4x4x128xbf16>
    tpu.vector_store %arg3[%c0_6, %c0_7, %c0_8], %6 {strides = array<i32>} : memref<4x4x128xbf16, #tpu.memory_space<vmem>>, vector<4x4x128xbf16>,
    %c0_9 = arith.constant 0 : index
    %c0_10 = arith.constant 0 : index
    %8 = vector.load %arg4[%c0_9, %c0_10] : memref<4x1xf32, #tpu.memory_space<vmem>>, vector<4x1xf32>
    %cst_11 = arith.constant dense<0.000000e+00> : vector<4xf32>
    %9 = vector.multi_reduction <add>, %5, %cst_11 [0, 2] : vector<4x4x128xf32> to vector<4xf32>
    %10 = vector.shape_cast %9 : vector<4xf32> to vector<4x1xf32>
    %11 = arith.addf %8, %10 : vector<4x1xf32>
    %c0_12 = arith.constant 0 : index
    %c0_13 = arith.constant 0 : index
    %12 = vector.load %arg4[%c0_12, %c0_13] : memref<4x1xf32, #tpu.memory_space<vmem>>, vector<4x1xf32>
    tpu.vector_store %arg4[%c0_12, %c0_13], %11 {strides = array<i32>} : memref<4x1xf32, #tpu.memory_space<vmem>>, vector<4x1xf32>,
    %c0_14 = arith.constant 0 : index
    %c0_15 = arith.constant 0 : index
    %13 = vector.load %arg5[%c0_14, %c0_15] : memref<4x1xf32, #tpu.memory_space<vmem>>, vector<4x1xf32>
    %14 = arith.mulf %5, %5 : vector<4x4x128xf32>
    %cst_16 = arith.constant dense<0.000000e+00> : vector<4xf32>
    %15 = vector.multi_reduction <add>, %14, %cst_16 [0, 2] : vector<4x4x128xf32> to vector<4xf32>
    %16 = vector.shape_cast %15 : vector<4xf32> to vector<4x1xf32>
    %17 = arith.addf %13, %16 : vector<4x1xf32>
    %c0_17 = arith.constant 0 : index
    %c0_18 = arith.constant 0 : index
    %18 = vector.load %arg5[%c0_17, %c0_18] : memref<4x1xf32, #tpu.memory_space<vmem>>, vector<4x1xf32>
    tpu.vector_store %arg5[%c0_17, %c0_18], %17 {strides = array<i32>} : memref<4x1xf32, #tpu.memory_space<vmem>>, vector<4x1xf32>,
    return
  }
  func.func @transform_0(%arg0: i32) -> (i32, i32, i32) {
    %c0_i32 = arith.constant 0 : i32
    %c0_i32_0 = arith.constant 0 : i32
    %c0_i32_1 = arith.constant 0 : i32
    %c0_i32_2 = arith.constant 0 : i32
    return %c0_i32, %c0_i32_0, %c0_i32_1 : i32, i32, i32
  }
  func.func @transform_1(%arg0: i32) -> (i32, i32, i32) {
    %c0_i32 = arith.constant 0 : i32
    %c0_i32_0 = arith.constant 0 : i32
    %c0_i32_1 = arith.constant 0 : i32
    return %c0_i32, %c0_i32_0, %arg0 : i32, i32, i32
  }
  func.func @transform_2(%arg0: i32) -> (i32, i32, i32) {
    %c0_i32 = arith.constant 0 : i32
    %c0_i32_0 = arith.constant 0 : i32
    %c0_i32_1 = arith.constant 0 : i32
    return %c0_i32, %c0_i32_0, %arg0 : i32, i32, i32
  }
  func.func @transform_3(%arg0: i32) -> (i32, i32) {
    %c0_i32 = arith.constant 0 : i32
    %c0_i32_0 = arith.constant 0 : i32
    %c0_i32_1 = arith.constant 0 : i32
    return %c0_i32, %c0_i32_0 : i32, i32
  }
  func.func @transform_4(%arg0: i32) -> (i32, i32) {
    %c0_i32 = arith.constant 0 : i32
    %c0_i32_0 = arith.constant 0 : i32
    %c0_i32_1 = arith.constant 0 : i32
    return %c0_i32, %c0_i32_0 : i32, i32
  }
}

module attributes {stable_mosaic.version = 11 : i64} {
  func.func @_bn_apply_kernel(%arg0: i32, %arg1: memref<4x4x128xbf16, #tpu.memory_space<vmem>>, %arg2: memref<4x1xf32, #tpu.memory_space<vmem>>, %arg3: memref<4x1xf32, #tpu.memory_space<vmem>>, %arg4: memref<4x4x128xf32, #tpu.memory_space<vmem>>) attributes {dimension_semantics = [#tpu.dimension_semantics<parallel>], iteration_bounds = array<i64: 1>, scalar_prefetch = 0 : i64, scratch_operands = 0 : i64, tpu.core_type = #tpu.core_type<tc>, window_params = [{transform_indices = @transform_0, window_bounds = array<i64: 4, 4, 128>}, {pipeline_mode = #tpu.pipeline_mode<synchronous>, transform_indices = @transform_1, window_bounds = array<i64: 4, 1>}, {pipeline_mode = #tpu.pipeline_mode<synchronous>, transform_indices = @transform_2, window_bounds = array<i64: 4, 1>}, {transform_indices = @transform_3, window_bounds = array<i64: 4, 4, 128>}]} {
    %c0 = arith.constant 0 : index
    %c0_0 = arith.constant 0 : index
    %c0_1 = arith.constant 0 : index
    %0 = vector.load %arg1[%c0, %c0_0, %c0_1] : memref<4x4x128xbf16, #tpu.memory_space<vmem>>, vector<4x4x128xbf16>
    %1 = arith.extf %0 : vector<4x4x128xbf16> to vector<4x4x128xf32>
    %c0_2 = arith.constant 0 : index
    %c0_3 = arith.constant 0 : index
    %2 = vector.load %arg2[%c0_2, %c0_3] : memref<4x1xf32, #tpu.memory_space<vmem>>, vector<4x1xf32>
    %3 = vector.shape_cast %2 : vector<4x1xf32> to vector<1x4x1xf32>
    %4 = vector.broadcast %3 : vector<1x4x1xf32> to vector<4x4x128xf32>
    %5 = arith.mulf %1, %4 : vector<4x4x128xf32>
    %c0_4 = arith.constant 0 : index
    %c0_5 = arith.constant 0 : index
    %6 = vector.load %arg3[%c0_4, %c0_5] : memref<4x1xf32, #tpu.memory_space<vmem>>, vector<4x1xf32>
    %7 = vector.shape_cast %6 : vector<4x1xf32> to vector<1x4x1xf32>
    %8 = vector.broadcast %7 : vector<1x4x1xf32> to vector<4x4x128xf32>
    %9 = arith.addf %5, %8 : vector<4x4x128xf32>
    %c0_6 = arith.constant 0 : index
    %c0_7 = arith.constant 0 : index
    %c0_8 = arith.constant 0 : index
    %10 = vector.load %arg4[%c0_6, %c0_7, %c0_8] : memref<4x4x128xf32, #tpu.memory_space<vmem>>, vector<4x4x128xf32>
    tpu.vector_store %arg4[%c0_6, %c0_7, %c0_8], %9 {strides = array<i32>} : memref<4x4x128xf32, #tpu.memory_space<vmem>>, vector<4x4x128xf32>,
    return
  }
  func.func @transform_0(%arg0: i32) -> (i32, i32, i32) {
    %c0_i32 = arith.constant 0 : i32
    %c0_i32_0 = arith.constant 0 : i32
    %c0_i32_1 = arith.constant 0 : i32
    return %c0_i32, %c0_i32_0, %arg0 : i32, i32, i32
  }
  func.func @transform_1(%arg0: i32) -> (i32, i32) {
    %c0_i32 = arith.constant 0 : i32
    %c0_i32_0 = arith.constant 0 : i32
    %c0_i32_1 = arith.constant 0 : i32
    return %c0_i32, %c0_i32_0 : i32, i32
  }
  func.func @transform_2(%arg0: i32) -> (i32, i32) {
    %c0_i32 = arith.constant 0 : i32
    %c0_i32_0 = arith.constant 0 : i32
    %c0_i32_1 = arith.constant 0 : i32
    return %c0_i32, %c0_i32_0 : i32, i32
  }
  func.func @transform_3(%arg0: i32) -> (i32, i32, i32) {
    %c0_i32 = arith.constant 0 : i32
    %c0_i32_0 = arith.constant 0 : i32
    %c0_i32_1 = arith.constant 0 : i32
    return %c0_i32, %c0_i32_0, %arg0 : i32, i32, i32
  }
}

</mosaic_0001>

<llo_original>
// kernel: unet_innermost_forward.3
$region0: #{unet_innermost_forward.3}
  #allocation0 [shape = 'u32[]', space=smem, size = 0x4, offset = 0x4, fixed_abs, tag = 'smem constant byte address 0x4 - core index']
  #allocation1 [shape = 'u32[144,128]{1,0:T(1,128)}', space=vmem, size = 0x12000, scoped, tag = 'internal scratch']
  %s0 = inlined_call_operand.vmem [shape: bf16[8,64], index: 0, kind: input, shape index: {}]
  %s1 = inlined_call_operand.vmem [shape: bf16[64,128], index: 1, kind: input, shape index: {}]
  %s2 = inlined_call_operand.vmem [shape: bf16[8,128], index: 2, kind: output, shape index: {}]
  %s3 = sld [smem:[#allocation0]]
  $region18: #{unet_innermost_forward.3} parent=0
    _
  %s5 = ssub.s32 1, %s3
  %s6 = scalar_select 0, %s5, %s3
  // Predicated region
  $region2: #{unet_innermost_forward.3} parent=0 // pred_check
    _
  $region3: #{unet_innermost_forward.3} parent=0 // pred_check_branch
    %8 = sbr.rel (0) target = $region5
  $region4: #{unet_innermost_forward.3} parent=0 // pred_region
    _
  $region5: #{unet_innermost_forward.3} parent=0 // pred_fallthru
    _
  // Predicated region
  $region6: #{unet_innermost_forward.3} parent=0 // pred_check
    _
  $region7: #{unet_innermost_forward.3} parent=0 // pred_check_branch
    %10 = sbr.rel (0) target = $region9
  $region8: #{unet_innermost_forward.3} parent=0 // pred_region
    _
  $region9: #{unet_innermost_forward.3} parent=0 // pred_fallthru
    _
  %v12 = vld [vmem:[%s1] sm:$0xf]
  %v13 = vld [vmem:[%s1 + $0x4] sm:$0xf]
  %v14 = vld [vmem:[%s1 + $0x8] sm:$0xf]
  %v15 = vld [vmem:[%s1 + $0xc] sm:$0xf]
  %v16 = vld [vmem:[%s1 + $0x10] sm:$0xf]
  %v17 = vld [vmem:[%s1 + $0x14] sm:$0xf]
  %v18 = vld [vmem:[%s1 + $0x18] sm:$0xf]
  %v19 = vld [vmem:[%s1 + $0x1c] sm:$0xf]
  %v20 = vunpack.c.l.bf16 %v12
  %v21 = vunpack.c.l.bf16 %v13
  %v22 = vunpack.c.l.bf16 %v14
  %v23 = vunpack.c.l.bf16 %v15
  %v24 = vunpack.c.l.bf16 %v16
  %v25 = vunpack.c.l.bf16 %v17
  %v26 = vunpack.c.l.bf16 %v18
  %v27 = vunpack.c.l.bf16 %v19
  %vm28 = vcmp.ge.f32.partialorder %v20, 0.0
  %vm29 = vcmp.ge.f32.partialorder %v21, 0.0
  %vm30 = vcmp.ge.f32.partialorder %v22, 0.0
  %vm31 = vcmp.ge.f32.partialorder %v23, 0.0
  %vm32 = vcmp.ge.f32.partialorder %v24, 0.0
  %vm33 = vcmp.ge.f32.partialorder %v25, 0.0
  %vm34 = vcmp.ge.f32.partialorder %v26, 0.0
  %vm35 = vcmp.ge.f32.partialorder %v27, 0.0
  %v36 = vmul.f32 %v20, 0.2
  %v37 = vmul.f32 %v21, 0.2
  %v38 = vmul.f32 %v22, 0.2
  %v39 = vmul.f32 %v23, 0.2
  %v40 = vmul.f32 %v24, 0.2
  %v41 = vmul.f32 %v25, 0.2
  %v42 = vmul.f32 %v26, 0.2
  %v43 = vmul.f32 %v27, 0.2
  %v44 = vsel %vm28, %v20, %v36
  %v45 = vsel %vm29, %v21, %v37
  %v46 = vsel %vm30, %v22, %v38
  %v47 = vsel %vm31, %v23, %v39
  %v48 = vsel %vm32, %v24, %v40
  %v49 = vsel %vm33, %v25, %v41
  %v50 = vsel %vm34, %v26, %v42
  %v51 = vsel %vm35, %v27, %v43
  %v52 = vld [vmem:[%s0] sm:$0xf]
  %v53 = vpack.c.bf16 %v45, %v44
  %v54 = vpack.c.bf16 %v47, %v46
  %v55 = vpack.c.bf16 %v49, %v48
  %v56 = vpack.c.bf16 %v51, %v50
  %vm57 = vcmask 523264
  %v59 = vsel %vm57, %v52, 0
  %61 = vmatprep.subr.bf16.mxu0 0
  %62 = vmatpush1.bf16.msra.mxu0 %v53
  %63 = vmatprep.subr.bf16.mxu0 0
  %64 = vmatpush1.bf16.msra.mxu0 %v54
  %65 = vmatprep.subr.bf16.mxu0 0
  %66 = vmatpush1.bf16.msra.mxu0 %v55
  %67 = vmatprep.subr.bf16.mxu0 0
  %68 = vmatpush1.bf16.msra.mxu0 %v56
  %69 = vmatprep.subr.bf16.mxu0 0
  %70 = vmatpush1.bf16.msra.mxu0 0
  %71 = vmatprep.subr.bf16.mxu0 0
  %72 = vmatpush1.bf16.msra.mxu0 0
  %73 = vmatprep.subr.bf16.mxu0 0
  %74 = vmatpush1.bf16.msra.mxu0 0
  %75 = vmatprep.subr.bf16.mxu0 0
  %76 = vmatpush1.bf16.msra.mxu0 0
  %77 = vmatprep.subr.bf16.mxu0 0
  %78 = vmatpush1.bf16.msra.mxu0 0
  %79 = vmatprep.subr.bf16.mxu0 0
  %80 = vmatpush1.bf16.msra.mxu0 0
  %81 = vmatprep.subr.bf16.mxu0 0
  %82 = vmatpush1.bf16.msra.mxu0 0
  %83 = vmatprep.subr.bf16.mxu0 0
  %84 = vmatpush1.bf16.msra.mxu0 0
  %85 = vmatprep.subr.bf16.mxu0 0
  %86 = vmatpush1.bf16.msra.mxu0 0
  %87 = vmatprep.subr.bf16.mxu0 0
  %88 = vmatpush1.bf16.msra.mxu0 0
  %89 = vmatprep.subr.bf16.mxu0 0
  %90 = vmatpush1.bf16.msra.mxu0 0
  %91 = vmatprep.subr.bf16.mxu0 0
  %92 = vmatpush1.bf16.msra.mxu0 0
  %93 = vmatprep.mubr.bf16.mxu0 0
  %94 = vmatmul.mubr.bf16.gmra.mrb[0].mxu0 %v59
  %v95 = vpop.f32.mrb[0].mxu0
  %v96 = vadd.f32 0.0, %v95
  %v97 = vpop.f32.mrb[0].mxu0
  %v98 = vpop.f32.mrb[0].mxu0
  %v99 = vpop.f32.mrb[0].mxu0
  %100 = vdwg.mxu0
  %v101 = vmax.f32 %v96, 0.0
  %v102 = vpack.c.bf16 %v101, %v101
  %103 = vst [vmem:[%s2] sm:$0xf] %v102
  // Predicated region
  $region10: #{unet_innermost_forward.3} parent=0 // pred_check
    _
  $region11: #{unet_innermost_forward.3} parent=0 // pred_check_branch
    %105 = sbr.rel (0) target = $region13
  $region12: #{unet_innermost_forward.3} parent=0 // pred_region
    _
  $region13: #{unet_innermost_forward.3} parent=0 // pred_fallthru
    _
  // Predicated region
  $region14: #{unet_innermost_forward.3} parent=0 // pred_check
    _
  $region15: #{unet_innermost_forward.3} parent=0 // pred_check_branch
    %107 = sbr.rel (0) target = $region17
  $region16: #{unet_innermost_forward.3} parent=0 // pred_region
    _
  $region17: #{unet_innermost_forward.3} parent=0 // pred_fallthru
    _

// kernel: unet_innermost_forward.5
$region0: #{unet_innermost_forward.5}
  #allocation0 [shape = 'u32[]', space=smem, size = 0x4, offset = 0x4, fixed_abs, tag = 'smem constant byte address 0x4 - core index']
  #allocation1 [shape = 'u32[144,128]{1,0:T(1,128)}', space=vmem, size = 0x12000, scoped, tag = 'internal scratch']
  %s0 = inlined_call_operand.vmem [shape: bf16[4,4,128], index: 0, kind: input, shape index: {}]
  %s1 = inlined_call_operand.vmem [shape: f32[4,1], index: 1, kind: input, shape index: {}]
  %s2 = inlined_call_operand.vmem [shape: f32[4,1], index: 2, kind: input, shape index: {}]
  %s3 = inlined_call_operand.vmem [shape: f32[4,4,128], index: 3, kind: output, shape index: {}]
  %s4 = sld [smem:[#allocation0]]
  $region22: #{unet_innermost_forward.5} parent=0
    _
  %s6 = ssub.s32 1, %s4
  %s7 = scalar_select 0, %s6, %s4
  // Predicated region
  $region2: #{unet_innermost_forward.5} parent=0 // pred_check
    _
  $region3: #{unet_innermost_forward.5} parent=0 // pred_check_branch
    %9 = sbr.rel (0) target = $region5
  $region4: #{unet_innermost_forward.5} parent=0 // pred_region
    _
  $region5: #{unet_innermost_forward.5} parent=0 // pred_fallthru
    _
  // Predicated region
  $region6: #{unet_innermost_forward.5} parent=0 // pred_check
    _
  $region7: #{unet_innermost_forward.5} parent=0 // pred_check_branch
    %11 = sbr.rel (0) target = $region9
  $region8: #{unet_innermost_forward.5} parent=0 // pred_region
    _
  $region9: #{unet_innermost_forward.5} parent=0 // pred_fallthru
    _
  // Predicated region
  $region10: #{unet_innermost_forward.5} parent=0 // pred_check
    _
  $region11: #{unet_innermost_forward.5} parent=0 // pred_check_branch
    %13 = sbr.rel (0) target = $region13
  $region12: #{unet_innermost_forward.5} parent=0 // pred_region
    _
  $region13: #{unet_innermost_forward.5} parent=0 // pred_fallthru
    _
  %v14 = vld [vmem:[%s0] sm:$0x3]
  %v15 = vld [vmem:[%s0 + $0x2] sm:$0x3]
  %v16 = vld [vmem:[%s0 + $0x4] sm:$0x3]
  %v17 = vld [vmem:[%s0 + $0x6] sm:$0x3]
  %v18 = vunpack.c.l.bf16 %v14
  %v19 = vunpack.c.l.bf16 %v15
  %v20 = vunpack.c.l.bf16 %v16
  %v21 = vunpack.c.l.bf16 %v17
  %v22 = vld [vmem:[%s1] sm:$0xf]
  %24 = vset.pattern.permute.xlu0 0
  %25 = vperm.xlu0 %24, %v22
  %v26 = vpop.permute.xlu0 %25
  %v28 = vmul.f32 %v18, %v26
  %v29 = vmul.f32 %v19, %v26
  %v30 = vmul.f32 %v20, %v26
  %v31 = vmul.f32 %v21, %v26
  %v32 = vld [vmem:[%s2] sm:$0xf]
  %34 = vset.pattern.permute.xlu0 0
  %35 = vperm.xlu0 %34, %v32
  %v36 = vpop.permute.xlu0 %35
  %v38 = vadd.f32 %v28, %v36
  %v39 = vadd.f32 %v29, %v36
  %v40 = vadd.f32 %v30, %v36
  %v41 = vadd.f32 %v31, %v36
  %42 = vst [vmem:[%s3] sm:$0xf] %v38
  %43 = vst [vmem:[%s3 + $0x4] sm:$0xf] %v39
  %44 = vst [vmem:[%s3 + $0x8] sm:$0xf] %v40
  %45 = vst [vmem:[%s3 + $0xc] sm:$0xf] %v41
  // Predicated region
  $region14: #{unet_innermost_forward.5} parent=0 // pred_check
    _
  $region15: #{unet_innermost_forward.5} parent=0 // pred_check_branch
    %47 = sbr.rel (0) target = $region17
  $region16: #{unet_innermost_forward.5} parent=0 // pred_region
    _
  $region17: #{unet_innermost_forward.5} parent=0 // pred_fallthru
    _
  // Predicated region
  $region18: #{unet_innermost_forward.5} parent=0 // pred_check
    _
  $region19: #{unet_innermost_forward.5} parent=0 // pred_check_branch
    %49 = sbr.rel (0) target = $region21
  $region20: #{unet_innermost_forward.5} parent=0 // pred_region
    _
  $region21: #{unet_innermost_forward.5} parent=0 // pred_fallthru
    _

// kernel: unet_innermost_forward.4
$region0: #{unet_innermost_forward.4}
  #allocation0 [shape = 'u32[]', space=smem, size = 0x4, offset = 0x4, fixed_abs, tag = 'smem constant byte address 0x4 - core index']
  #allocation1 [shape = 'u32[144,128]{1,0:T(1,128)}', space=vmem, size = 0x12000, scoped, tag = 'internal scratch']
  %s0 = inlined_call_operand.vmem [shape: bf16[4,4,32], index: 0, kind: input, shape index: {}]
  %s1 = inlined_call_operand.vmem [shape: bf16[4,32,128], index: 1, kind: input, shape index: {}]
  %s2 = inlined_call_operand.vmem [shape: bf16[4,4,128], index: 2, kind: output, shape index: {0}]
  %s3 = inlined_call_operand.vmem [shape: f32[4,1], index: 3, kind: output, shape index: {1}]
  %s4 = inlined_call_operand.vmem [shape: f32[4,1], index: 4, kind: output, shape index: {2}]
  %5 = xla_tuple %s2, %s3, %s4
  %s6 = sld [smem:[#allocation0]]
  $region38: #{unet_innermost_forward.4} parent=0
    _
  %s8 = ssub.s32 1, %s6
  %s9 = scalar_select 0, %s8, %s6
  // Predicated region
  $region2: #{unet_innermost_forward.4} parent=0 // pred_check
    _
  $region3: #{unet_innermost_forward.4} parent=0 // pred_check_branch
    %11 = sbr.rel (0) target = $region5
  $region4: #{unet_innermost_forward.4} parent=0 // pred_region
    _
  $region5: #{unet_innermost_forward.4} parent=0 // pred_fallthru
    _
  // Predicated region
  $region6: #{unet_innermost_forward.4} parent=0 // pred_check
    _
  $region7: #{unet_innermost_forward.4} parent=0 // pred_check_branch
    %13 = sbr.rel (0) target = $region9
  $region8: #{unet_innermost_forward.4} parent=0 // pred_region
    _
  $region9: #{unet_innermost_forward.4} parent=0 // pred_fallthru
    _
  %p15 = scmp.eq.s32.totalorder 0, 0
  // Predicated region
  $region10: #{unet_innermost_forward.4} parent=0 // pred_check
    %p16 = pneg %p15
  $region11: #{unet_innermost_forward.4} parent=0 // pred_check_branch
    %18 = sbr.rel (%p16) target = $region13
  $region12: #{unet_innermost_forward.4} parent=0 // pred_region
    %vm19 = vcmask 3072
    %20 = vst.msk [vmem:[%s3] sm:$0xf] %vm19, 0.0
    %21 = vst.msk [vmem:[%s4] sm:$0xf] %vm19, 0.0
  $region13: #{unet_innermost_forward.4} parent=0 // pred_fallthru
    _
  %v22 = vld [vmem:[%s0] sm:$0x3]
  %v23 = vld [vmem:[%s0 + $0x2] sm:$0x3]
  %v24 = vld [vmem:[%s0 + $0x4] sm:$0x3]
  %v25 = vld [vmem:[%s0 + $0x6] sm:$0x3]
  %v26 = vld [vmem:[%s1] sm:$0xf]
  %v27 = vld [vmem:[%s1 + $0x4] sm:$0xf]
  %v28 = vld [vmem:[%s1 + $0x8] sm:$0xf]
  %v29 = vld [vmem:[%s1 + $0xc] sm:$0xf]
  %v30 = vld [vmem:[%s1 + $0x10] sm:$0xf]
  %v31 = vld [vmem:[%s1 + $0x14] sm:$0xf]
  %v32 = vld [vmem:[%s1 + $0x18] sm:$0xf]
  %v33 = vld [vmem:[%s1 + $0x1c] sm:$0xf]
  %v34 = vld [vmem:[%s1 + $0x20] sm:$0xf]
  %v35 = vld [vmem:[%s1 + $0x24] sm:$0xf]
  %v36 = vld [vmem:[%s1 + $0x28] sm:$0xf]
  %v37 = vld [vmem:[%s1 + $0x2c] sm:$0xf]
  %v38 = vld [vmem:[%s1 + $0x30] sm:$0xf]
  %v39 = vld [vmem:[%s1 + $0x34] sm:$0xf]
  %v40 = vld [vmem:[%s1 + $0x38] sm:$0xf]
  %v41 = vld [vmem:[%s1 + $0x3c] sm:$0xf]
  %v46 = vunpack.c.l.b16 %v26
  %v47 = vunpack.c.l.b16 %v27
  %v48 = vunpack.c.l.b16 %v28
  %v49 = vunpack.c.l.b16 %v29
  %v50 = vpack.c.b16 %v47, %v46
  %v51 = vpack.c.b16 %v49, %v48
  %vm54 = vcmask 261120
  %v56 = vsel %vm54, %v22, 0
  %58 = vmatprep.subr.bf16.mxu0 0
  %59 = vmatpush1.bf16.msra.mxu0 %v50
  %60 = vmatprep.subr.bf16.mxu0 0
  %61 = vmatpush1.bf16.msra.mxu0 %v51
  %62 = vmatprep.subr.bf16.mxu0 0
  %63 = vmatpush1.bf16.msra.mxu0 0
  %64 = vmatprep.subr.bf16.mxu0 0
  %65 = vmatpush1.bf16.msra.mxu0 0
  %66 = vmatprep.subr.bf16.mxu0 0
  %67 = vmatpush1.bf16.msra.mxu0 0
  %68 = vmatprep.subr.bf16.mxu0 0
  %69 = vmatpush1.bf16.msra.mxu0 0
  %70 = vmatprep.subr.bf16.mxu0 0
  %71 = vmatpush1.bf16.msra.mxu0 0
  %72 = vmatprep.subr.bf16.mxu0 0
  %73 = vmatpush1.bf16.msra.mxu0 0
  %74 = vmatprep.subr.bf16.mxu0 0
  %75 = vmatpush1.bf16.msra.mxu0 0
  %76 = vmatprep.subr.bf16.mxu0 0
  %77 = vmatpush1.bf16.msra.mxu0 0
  %78 = vmatprep.subr.bf16.mxu0 0
  %79 = vmatpush1.bf16.msra.mxu0 0
  %80 = vmatprep.subr.bf16.mxu0 0
  %81 = vmatpush1.bf16.msra.mxu0 0
  %82 = vmatprep.subr.bf16.mxu0 0
  %83 = vmatpush1.bf16.msra.mxu0 0
  %84 = vmatprep.subr.bf16.mxu0 0
  %85 = vmatpush1.bf16.msra.mxu0 0
  %86 = vmatprep.subr.bf16.mxu0 0
  %87 = vmatpush1.bf16.msra.mxu0 0
  %88 = vmatprep.subr.bf16.mxu0 0
  %89 = vmatpush1.bf16.msra.mxu0 0
  %90 = vmatprep.mubr.bf16.mxu0 0
  %91 = vmatmul.mubr.bf16.gmra.mrb[0].mxu0 %v56
  %v92 = vpop.f32.mrb[0].mxu0
  %v93 = vadd.f32 0.0, %v92
  %v94 = vpop.f32.mrb[0].mxu0
  %v95 = vpop.f32.mrb[0].mxu0
  %v96 = vpop.f32.mrb[0].mxu0
  %97 = vdwg.mxu0
  %v102 = vunpack.c.l.b16 %v30
  %v103 = vunpack.c.l.b16 %v31
  %v104 = vunpack.c.l.b16 %v32
  %v105 = vunpack.c.l.b16 %v33
  %v106 = vpack.c.b16 %v103, %v102
  %v107 = vpack.c.b16 %v105, %v104
  %v111 = vsel %vm54, %v23, 0
  %113 = vmatprep.subr.bf16.mxu0 0
  %114 = vmatpush1.bf16.msra.mxu0 %v106
  %115 = vmatprep.subr.bf16.mxu0 0
  %116 = vmatpush1.bf16.msra.mxu0 %v107
  %117 = vmatprep.subr.bf16.mxu0 0
  %118 = vmatpush1.bf16.msra.mxu0 0
  %119 = vmatprep.subr.bf16.mxu0 0
  %120 = vmatpush1.bf16.msra.mxu0 0
  %121 = vmatprep.subr.bf16.mxu0 0
  %122 = vmatpush1.bf16.msra.mxu0 0
  %123 = vmatprep.subr.bf16.mxu0 0
  %124 = vmatpush1.bf16.msra.mxu0 0
  %125 = vmatprep.subr.bf16.mxu0 0
  %126 = vmatpush1.bf16.msra.mxu0 0
  %127 = vmatprep.subr.bf16.mxu0 0
  %128 = vmatpush1.bf16.msra.mxu0 0
  %129 = vmatprep.subr.bf16.mxu0 0
  %130 = vmatpush1.bf16.msra.mxu0 0
  %131 = vmatprep.subr.bf16.mxu0 0
  %132 = vmatpush1.bf16.msra.mxu0 0
  %133 = vmatprep.subr.bf16.mxu0 0
  %134 = vmatpush1.bf16.msra.mxu0 0
  %135 = vmatprep.subr.bf16.mxu0 0
  %136 = vmatpush1.bf16.msra.mxu0 0
  %137 = vmatprep.subr.bf16.mxu0 0
  %138 = vmatpush1.bf16.msra.mxu0 0
  %139 = vmatprep.subr.bf16.mxu0 0
  %140 = vmatpush1.bf16.msra.mxu0 0
  %141 = vmatprep.subr.bf16.mxu0 0
  %142 = vmatpush1.bf16.msra.mxu0 0
  %143 = vmatprep.subr.bf16.mxu0 0
  %144 = vmatpush1.bf16.msra.mxu0 0
  %145 = vmatprep.mubr.bf16.mxu0 0
  %146 = vmatmul.mubr.bf16.gmra.mrb[0].mxu0 %v111
  %v147 = vpop.f32.mrb[0].mxu0
  %v148 = vadd.f32 0.0, %v147
  %v149 = vpop.f32.mrb[0].mxu0
  %v150 = vpop.f32.mrb[0].mxu0
  %v151 = vpop.f32.mrb[0].mxu0
  %152 = vdwg.mxu0
  %v157 = vunpack.c.l.b16 %v34
  %v158 = vunpack.c.l.b16 %v35
  %v159 = vunpack.c.l.b16 %v36
  %v160 = vunpack.c.l.b16 %v37
  %v161 = vpack.c.b16 %v158, %v157
  %v162 = vpack.c.b16 %v160, %v159
  %v166 = vsel %vm54, %v24, 0
  %168 = vmatprep.subr.bf16.mxu0 0
  %169 = vmatpush1.bf16.msra.mxu0 %v161
  %170 = vmatprep.subr.bf16.mxu0 0
  %171 = vmatpush1.bf16.msra.mxu0 %v162
  %172 = vmatprep.subr.bf16.mxu0 0
  %173 = vmatpush1.bf16.msra.mxu0 0
  %174 = vmatprep.subr.bf16.mxu0 0
  %175 = vmatpush1.bf16.msra.mxu0 0
  %176 = vmatprep.subr.bf16.mxu0 0
  %177 = vmatpush1.bf16.msra.mxu0 0
  %178 = vmatprep.subr.bf16.mxu0 0
  %179 = vmatpush1.bf16.msra.mxu0 0
  %180 = vmatprep.subr.bf16.mxu0 0
  %181 = vmatpush1.bf16.msra.mxu0 0
  %182 = vmatprep.subr.bf16.mxu0 0
  %183 = vmatpush1.bf16.msra.mxu0 0
  %184 = vmatprep.subr.bf16.mxu0 0
  %185 = vmatpush1.bf16.msra.mxu0 0
  %186 = vmatprep.subr.bf16.mxu0 0
  %187 = vmatpush1.bf16.msra.mxu0 0
  %188 = vmatprep.subr.bf16.mxu0 0
  %189 = vmatpush1.bf16.msra.mxu0 0
  %190 = vmatprep.subr.bf16.mxu0 0
  %191 = vmatpush1.bf16.msra.mxu0 0
  %192 = vmatprep.subr.bf16.mxu0 0
  %193 = vmatpush1.bf16.msra.mxu0 0
  %194 = vmatprep.subr.bf16.mxu0 0
  %195 = vmatpush1.bf16.msra.mxu0 0
  %196 = vmatprep.subr.bf16.mxu0 0
  %197 = vmatpush1.bf16.msra.mxu0 0
  %198 = vmatprep.subr.bf16.mxu0 0
  %199 = vmatpush1.bf16.msra.mxu0 0
  %200 = vmatprep.mubr.bf16.mxu0 0
  %201 = vmatmul.mubr.bf16.gmra.mrb[0].mxu0 %v166
  %v202 = vpop.f32.mrb[0].mxu0
  %v203 = vadd.f32 0.0, %v202
  %v204 = vpop.f32.mrb[0].mxu0
  %v205 = vpop.f32.mrb[0].mxu0
  %v206 = vpop.f32.mrb[0].mxu0
  %207 = vdwg.mxu0
  %v212 = vunpack.c.l.b16 %v38
  %v213 = vunpack.c.l.b16 %v39
  %v214 = vunpack.c.l.b16 %v40
  %v215 = vunpack.c.l.b16 %v41
  %v216 = vpack.c.b16 %v213, %v212
  %v217 = vpack.c.b16 %v215, %v214
  %v221 = vsel %vm54, %v25, 0
  %223 = vmatprep.subr.bf16.mxu0 0
  %224 = vmatpush1.bf16.msra.mxu0 %v216
  %225 = vmatprep.subr.bf16.mxu0 0
  %226 = vmatpush1.bf16.msra.mxu0 %v217
  %227 = vmatprep.subr.bf16.mxu0 0
  %228 = vmatpush1.bf16.msra.mxu0 0
  %229 = vmatprep.subr.bf16.mxu0 0
  %230 = vmatpush1.bf16.msra.mxu0 0
  %231 = vmatprep.subr.bf16.mxu0 0
  %232 = vmatpush1.bf16.msra.mxu0 0
  %233 = vmatprep.subr.bf16.mxu0 0
  %234 = vmatpush1.bf16.msra.mxu0 0
  %235 = vmatprep.subr.bf16.mxu0 0
  %236 = vmatpush1.bf16.msra.mxu0 0
  %237 = vmatprep.subr.bf16.mxu0 0
  %238 = vmatpush1.bf16.msra.mxu0 0
  %239 = vmatprep.subr.bf16.mxu0 0
  %240 = vmatpush1.bf16.msra.mxu0 0
  %241 = vmatprep.subr.bf16.mxu0 0
  %242 = vmatpush1.bf16.msra.mxu0 0
  %243 = vmatprep.subr.bf16.mxu0 0
  %244 = vmatpush1.bf16.msra.mxu0 0
  %245 = vmatprep.subr.bf16.mxu0 0
  %246 = vmatpush1.bf16.msra.mxu0 0
  %247 = vmatprep.subr.bf16.mxu0 0
  %248 = vmatpush1.bf16.msra.mxu0 0
  %249 = vmatprep.subr.bf16.mxu0 0
  %250 = vmatpush1.bf16.msra.mxu0 0
  %251 = vmatprep.subr.bf16.mxu0 0
  %252 = vmatpush1.bf16.msra.mxu0 0
  %253 = vmatprep.subr.bf16.mxu0 0
  %254 = vmatpush1.bf16.msra.mxu0 0
  %255 = vmatprep.mubr.bf16.mxu0 0
  %256 = vmatmul.mubr.bf16.gmra.mrb[0].mxu0 %v221
  %v257 = vpop.f32.mrb[0].mxu0
  %v258 = vadd.f32 0.0, %v257
  %v259 = vpop.f32.mrb[0].mxu0
  %v260 = vpop.f32.mrb[0].mxu0
  %v261 = vpop.f32.mrb[0].mxu0
  %262 = vdwg.mxu0
  %v263 = vpack.c.bf16 %v93, %v93
  %v264 = vpack.c.bf16 %v148, %v148
  %v265 = vpack.c.bf16 %v203, %v203
  %v266 = vpack.c.bf16 %v258, %v258
  %267 = vst [vmem:[%s2] sm:$0x3] %v263
  %268 = vst [vmem:[%s2 + $0x2] sm:$0x3] %v264
  %269 = vst [vmem:[%s2 + $0x4] sm:$0x3] %v265
  %270 = vst [vmem:[%s2 + $0x6] sm:$0x3] %v266
  %v271 = vld [vmem:[%s3] sm:$0xf]
  %vm272 = vcmask 1043456
  %v273 = vsel %vm272, %v93, 0.0
  %v274 = vsel %vm272, %v148, 0.0
  %v275 = vadd.f32 %v273, %v274
  %v276 = vsel %vm272, %v203, 0.0
  %v277 = vadd.f32 %v275, %v276
  %v278 = vsel %vm272, %v258, 0.0
  %v279 = vadd.f32 %v277, %v278
  %280 = vadd.xlane.f32.xlu0 %v279
  %v281 = vpop.xlane.xlu0 %280
  %v282 = vadd.f32 %v271, %v281
  %vm283 = vcmask 3072
  %284 = vst.msk [vmem:[%s3] sm:$0xf] %vm283, %v282
  %v285 = vld [vmem:[%s4] sm:$0xf]
  %v286 = vmul.f32 %v93, %v93
  %v287 = vmul.f32 %v148, %v148
  %v288 = vmul.f32 %v203, %v203
  %v289 = vmul.f32 %v258, %v258
  %v290 = vsel %vm272, %v286, 0.0
  %v291 = vsel %vm272, %v287, 0.0
  %v292 = vadd.f32 %v290, %v291
  %v293 = vsel %vm272, %v288, 0.0
  %v294 = vadd.f32 %v292, %v293
  %v295 = vsel %vm272, %v289, 0.0
  %v296 = vadd.f32 %v294, %v295
  %297 = vadd.xlane.f32.xlu0 %v296
  %v298 = vpop.xlane.xlu0 %297
  %v299 = vadd.f32 %v285, %v298
  %300 = vst.msk [vmem:[%s4] sm:$0xf] %vm283, %v299
  // Predicated region
  $region14: #{unet_innermost_forward.4} parent=0 // pred_check
    _
  $region15: #{unet_innermost_forward.4} parent=0 // pred_check_branch
    %302 = sbr.rel (0) target = $region17
  $region16: #{unet_innermost_forward.4} parent=0 // pred_region
    _
  $region17: #{unet_innermost_forward.4} parent=0 // pred_fallthru
    _
  // Predicated region
  $region18: #{unet_innermost_forward.4} parent=0 // pred_check
    _
  $region19: #{unet_innermost_forward.4} parent=0 // pred_check_branch
    %304 = sbr.rel (0) target = $region21
  $region20: #{unet_innermost_forward.4} parent=0 // pred_region
    _
  $region21: #{unet_innermost_forward.4} parent=0 // pred_fallthru
    _
  // Predicated region
  $region22: #{unet_innermost_forward.4} parent=0 // pred_check
    _
  $region23: #{unet_innermost_forward.4} parent=0 // pred_check_branch
    %306 = sbr.rel (0) target = $region25
  $region24: #{unet_innermost_forward.4} parent=0 // pred_region
    _
  $region25: #{unet_innermost_forward.4} parent=0 // pred_fallthru
    _
  // Predicated region
  $region26: #{unet_innermost_forward.4} parent=0 // pred_check
    _
  $region27: #{unet_innermost_forward.4} parent=0 // pred_check_branch
    %308 = sbr.rel (0) target = $region29
  $region28: #{unet_innermost_forward.4} parent=0 // pred_region
    _
  $region29: #{unet_innermost_forward.4} parent=0 // pred_fallthru
    _
  // Predicated region
  $region30: #{unet_innermost_forward.4} parent=0 // pred_check
    _
  $region31: #{unet_innermost_forward.4} parent=0 // pred_check_branch
    %310 = sbr.rel (0) target = $region33
  $region32: #{unet_innermost_forward.4} parent=0 // pred_region
    _
  $region33: #{unet_innermost_forward.4} parent=0 // pred_fallthru
    _
  // Predicated region
  $region34: #{unet_innermost_forward.4} parent=0 // pred_check
    _
  $region35: #{unet_innermost_forward.4} parent=0 // pred_check_branch
    %312 = sbr.rel (0) target = $region37
  $region36: #{unet_innermost_forward.4} parent=0 // pred_region
    _
  $region37: #{unet_innermost_forward.4} parent=0 // pred_fallthru
    _

</llo_original>
